<compile_context>
chip_gen: v5e
topology: v5e:2x2
jax: 0.10.0
libtpu: 0.0.40
codegen_flags: <defaults>
</compile_context>

<pallas_src>
import jax
import jax.numpy as jnp
from jax import lax
from jax.experimental import pallas as pl
from jax.experimental.pallas import tpu as pltpu

_LANE = 128
_SUBLANE = 8


def _round_up(x, m):
    return ((x + m - 1) // m) * m


def _vmem_capacity_bytes():
    """Physical VMEM per TensorCore; conservative fallback = v7x (64 MiB)."""
    try:
        cap = int(pltpu.get_tpu_info().vmem_capacity_bytes)
        if cap > 0:
            return cap
    except Exception:
        pass
    return 64 * 1024 * 1024


def _pick_tiles(n, c, hw, x_itemsize, vmem_cap):
    """Choose (n_tile, hw_tile) respecting the (8,128) rule and a per-buffer
    VMEM budget derived from the chip's physical VMEM."""
    # --- batch tile --------------------------------------------------------
    # >= 2 blocks on the "parallel" axis whenever N > 1 (both v7x TensorCores
    # get work); 8 rows per block for large N.  Ragged batch tails are handled
    # by the cdiv grid (OOB output rows are dropped by Pallas, no masking
    # needed since the per-row reduction never mixes rows).
    if n >= 16:
        n_tile = 8
    elif n >= 2:
        n_tile = (n + 1) // 2
    else:
        n_tile = 1

    # --- spatial tile ------------------------------------------------------
    # Per-buffer x budget ~= 1/8 of physical VMEM (the pipeline double-buffers
    # it), clamped to [2, 12] MiB: big enough that the ~0.35us/step grid
    # overhead stays <10% of the per-step DMA time on all generations, small
    # enough to fit v7x's 64 MiB VMEM alongside the resident weight.
    sub = max(_SUBLANE, 32 // x_itemsize)          # sublane packing of C
    c_sub = _round_up(c, sub)
    budget = min(max(vmem_cap // 8, 2 << 20), 12 << 20)

    def max_hw_for(nt):
        return (budget // max(1, nt * c_sub * x_itemsize)) // _LANE * _LANE

    # For large C, shrink the batch tile before the spatial tile so each
    # strided DMA row (hw_tile * itemsize bytes) stays long.
    while n_tile > 1 and max_hw_for(n_tile) < 4 * _LANE:
        n_tile = max(1, n_tile // 2)

    max_hw = max(_LANE, max_hw_for(n_tile))
    # Either the full HW extent (any size is legal when it equals the array
    # dim) or a multiple of 128; never a degenerate exact-divisor fallback.
    hw_tile = hw if hw <= max_hw else max_hw
    return n_tile, hw_tile


def _vmem_limit_bytes(n_tile, c, hw_tile, x_itemsize, w_itemsize, o_itemsize,
                      vmem_cap):
    """Explicit scoped-VMEM limit from the real (padded, double-buffered)
    footprint, with headroom, capped below physical VMEM."""
    c_lane = _round_up(c, _LANE)
    sub_x = max(_SUBLANE, 32 // x_itemsize)
    sub_w = max(_SUBLANE, 32 // w_itemsize)
    sub_o = max(_SUBLANE, 32 // o_itemsize)

    x_blk = n_tile * _round_up(c, sub_x) * _round_up(hw_tile, _LANE) * x_itemsize
    w_blk = _round_up(c, sub_w) * c_lane * w_itemsize     # double-buffered even
    b_blk = _SUBLANE * c_lane * 4                         # with a const index map
    o_blk = n_tile * sub_o * c_lane * o_itemsize
    acc_blk = _round_up(n_tile, _SUBLANE) * c_lane * 4

    footprint = 2 * (x_blk + w_blk + b_blk + o_blk) + acc_blk
    limit = max(32 << 20, footprint + footprint // 4 + (4 << 20))
    limit = min(limit, max(vmem_cap - (8 << 20), footprint + (2 << 20)))
    return int(limit)


def _make_kernel(hw_total, hw_tile, inv_hw, needs_mask):
    def kernel(x_ref, w_ref, b_ref, o_ref, acc_ref):
        # x_ref: (n_tile, C, hw_tile)   w_ref: (C_in, C_out) in x dtype
        # b_ref: (1, C) f32             o_ref: (n_tile, 1, C)
        # acc_ref: (n_tile, C) f32 scratch
        k = pl.program_id(1)

        @pl.when(k == 0)
        def _():
            acc_ref[...] = jnp.zeros_like(acc_ref)

        x = x_ref[...].astype(jnp.float32)
        if needs_mask:
            # Last HW block is partial: its out-of-bounds lanes hold
            # unspecified data which would corrupt the sum -> mask them.
            rem = hw_total - k * hw_tile
            lane = lax.broadcasted_iota(jnp.int32, x.shape, 2)
            x = jnp.where(lane < rem, x, 0.0)

        # Per-step spatial partial sum (f32).  The cross-lane reduce is
        # XLU/VPU filler fully hidden under the x DMA at these tile sizes;
        # a lane-partial (n_tile, C, 128) accumulator was considered but the
        # reshape it needs risks a VMEM relayout, so the known-good lowering
        # is kept.
        acc_ref[...] += jnp.sum(x, axis=-1)

        @pl.when(k == pl.num_programs(1) - 1)
        def _():
            pooled = acc_ref[...] * inv_hw                       # (n_tile, C)
            logits = jnp.dot(pooled, w_ref[...].astype(jnp.float32),
                             preferred_element_type=jnp.float32)
            logits = logits + b_ref[...]
            gate = jax.nn.sigmoid(logits)
            o_ref[...] = gate[:, None, :].astype(o_ref.dtype)    # (n_tile,1,C)

    return kernel


def channel_guided_attention(x, weight, bias):
    """x: (N, C, H, W); weight: (C, C, 1, 1); bias: (C,).
    Returns (N, C, 1, 1), exactly like the PyTorch module's forward."""
    N, C, H, W = x.shape
    HW = H * W
    x_flat = x.reshape(N, C, HW)                     # free (contiguous) reshape

    vmem_cap = _vmem_capacity_bytes()
    n_tile, hw_tile = _pick_tiles(N, C, HW, x.dtype.itemsize, vmem_cap)

    # 1x1-conv weight (C_out, C_in, 1, 1) -> (C_in, C_out), kept in x's dtype.
    w_t = jnp.transpose(weight.reshape(C, C)).astype(x.dtype)
    b2d = bias.reshape(1, C).astype(jnp.float32)

    grid = (pl.cdiv(N, n_tile), pl.cdiv(HW, hw_tile))
    needs_mask = (HW % hw_tile) != 0
    inv_hw = 1.0 / float(HW)

    kernel = _make_kernel(HW, hw_tile, inv_hw, needs_mask)
    vmem_limit = _vmem_limit_bytes(n_tile, C, hw_tile,
                                   x.dtype.itemsize, w_t.dtype.itemsize,
                                   x.dtype.itemsize, vmem_cap)

    out = pl.pallas_call(
        kernel,
        out_shape=jax.ShapeDtypeStruct((N, 1, C), x.dtype),
        grid_spec=pltpu.PrefetchScalarGridSpec(
            num_scalar_prefetch=0,
            grid=grid,
            in_specs=[
                # x: streamed, double-buffered per (batch-tile, HW-tile).
                pl.BlockSpec((n_tile, C, hw_tile), lambda i, k: (i, 0, k)),
                # weight / bias: constant index maps -> fetched once, resident.
                pl.BlockSpec((C, C), lambda i, k: (0, 0)),
                pl.BlockSpec((1, C), lambda i, k: (0, 0)),
            ],
            out_specs=pl.BlockSpec((n_tile, 1, C), lambda i, k: (i, 0, 0)),
            scratch_shapes=[pltpu.VMEM((n_tile, C), jnp.float32)],
        ),
        compiler_params=pltpu.CompilerParams(
            dimension_semantics=("parallel", "arbitrary"),
            vmem_limit_bytes=vmem_limit,
        ),
        cost_estimate=pl.CostEstimate(
            flops=int(N * C * HW + 2 * N * C * C),
            transcendentals=int(N * C),
            bytes_accessed=int(N * C * HW * x.dtype.itemsize
                               + C * C * w_t.dtype.itemsize
                               + N * C * x.dtype.itemsize),
        ),
    )(x_flat, w_t, b2d)

    return out.reshape(N, C, 1, 1)


def _reference(x, weight, bias):
    # Pure-JAX reference for validation.
    C = weight.shape[0]
    pooled = jnp.mean(x.astype(jnp.float32), axis=(2, 3))            # (N, C)
    logits = pooled @ weight.reshape(C, C).T.astype(jnp.float32) + bias.astype(jnp.float32)
    return jax.nn.sigmoid(logits).astype(x.dtype)[:, :, None, None]


if __name__ == "__main__":
    N, C, H, W = 2, 4, 16, 16
    key = jax.random.PRNGKey(0)
    kx, kw, kb = jax.random.split(key, 3)

    x = jax.random.normal(kx, (N, C, H, W), dtype=jnp.float32)
    # Conv2d(C, C, kernel_size=1): weight (C, C, 1, 1), bias (C,)
    weight = jax.random.normal(kw, (C, C, 1, 1), dtype=jnp.float32) * 0.1
    bias = jax.random.normal(kb, (C,), dtype=jnp.float32) * 0.1

    y = channel_guided_attention(x, weight, bias)
    y = jax.block_until_ready(y)

    y_ref = _reference(x, weight, bias)
    assert y.shape == (N, C, 1, 1)
    assert jnp.allclose(y, y_ref, atol=1e-5, rtol=1e-5), "mismatch vs reference"

    print("KERNEL_OK")
</pallas_src>

<mosaic_0001>
module attributes {stable_mosaic.version = 11 : i64} {
  func.func @kernel(%arg0: i32, %arg1: i32, %arg2: memref<1x4x256xf32, #tpu.memory_space<vmem>>, %arg3: memref<4x4xf32, #tpu.memory_space<vmem>>, %arg4: memref<1x4xf32, #tpu.memory_space<vmem>>, %arg5: memref<1x1x4xf32, #tpu.memory_space<vmem>>, %arg6: memref<1x4xf32, #tpu.memory_space<vmem>>) attributes {dimension_semantics = [#tpu.dimension_semantics<parallel>, #tpu.dimension_semantics<arbitrary>], iteration_bounds = array<i64: 2, 1>, scalar_prefetch = 0 : i64, scratch_operands = 1 : i64, tpu.core_type = #tpu.core_type<tc>, window_params = [{transform_indices = @transform_0, window_bounds = array<i64: 1, 4, 256>}, {pipeline_mode = #tpu.pipeline_mode<synchronous>, transform_indices = @transform_1, window_bounds = array<i64: 4, 4>}, {pipeline_mode = #tpu.pipeline_mode<synchronous>, transform_indices = @transform_2, window_bounds = array<i64: 1, 4>}, {transform_indices = @transform_3, window_bounds = array<i64: 1, 1, 4>}]} {
    %c0_i32 = arith.constant 0 : i32
    %0 = arith.cmpi eq, %arg1, %c0_i32 : i32
    %1 = arith.extui %0 : i1 to i32
    %c0_i32_0 = arith.constant 0 : i32
    %2 = arith.cmpi ne, %1, %c0_i32_0 : i32
    scf.if %2 {
      %cst_9 = arith.constant 0.000000e+00 : f32
      %11 = vector.broadcast %cst_9 : f32 to vector<1x4xf32>
      %c0_10 = arith.constant 0 : index
      %c0_11 = arith.constant 0 : index
      %12 = vector.load %arg6[%c0_10, %c0_11] : memref<1x4xf32, #tpu.memory_space<vmem>>, vector<1x4xf32>
      tpu.vector_store %arg6[%c0_10, %c0_11], %11 {strides = array<i32>} : memref<1x4xf32, #tpu.memory_space<vmem>>, vector<1x4xf32>,
    } else {
    }
    %c0 = arith.constant 0 : index
    %c0_1 = arith.constant 0 : index
    %c0_2 = arith.constant 0 : index
    %3 = vector.load %arg2[%c0, %c0_1, %c0_2] : memref<1x4x256xf32, #tpu.memory_space<vmem>>, vector<1x4x256xf32>
    %c0_3 = arith.constant 0 : index
    %c0_4 = arith.constant 0 : index
    %4 = vector.load %arg6[%c0_3, %c0_4] : memref<1x4xf32, #tpu.memory_space<vmem>>, vector<1x4xf32>
    %cst = arith.constant dense<0.000000e+00> : vector<1x4xf32>
    %5 = vector.multi_reduction <add>, %3, %cst [2] : vector<1x4x256xf32> to vector<1x4xf32>
    %6 = arith.addf %4, %5 : vector<1x4xf32>
    %c0_5 = arith.constant 0 : index
    %c0_6 = arith.constant 0 : index
    %7 = vector.load %arg6[%c0_5, %c0_6] : memref<1x4xf32, #tpu.memory_space<vmem>>, vector<1x4xf32>
    tpu.vector_store %arg6[%c0_5, %c0_6], %6 {strides = array<i32>} : memref<1x4xf32, #tpu.memory_space<vmem>>, vector<1x4xf32>,
    %c0_i32_7 = arith.constant 0 : i32
    %8 = arith.cmpi eq, %arg1, %c0_i32_7 : i32
    %9 = arith.extui %8 : i1 to i32
    %c0_i32_8 = arith.constant 0 : i32
    %10 = arith.cmpi ne, %9, %c0_i32_8 : i32
    scf.if %10 {
      %c0_9 = arith.constant 0 : index
      %c0_10 = arith.constant 0 : index
      %11 = vector.load %arg6[%c0_9, %c0_10] : memref<1x4xf32, #tpu.memory_space<vmem>>, vector<1x4xf32>
      %cst_11 = arith.constant 3.906250e-03 : f32
      %12 = vector.broadcast %cst_11 : f32 to vector<1x4xf32>
      %13 = arith.mulf %11, %12 : vector<1x4xf32>
      %c0_12 = arith.constant 0 : index
      %c0_13 = arith.constant 0 : index
      %14 = vector.load %arg3[%c0_12, %c0_13] : memref<4x4xf32, #tpu.memory_space<vmem>>, vector<4x4xf32>
      %cst_14 = arith.constant dense<0.000000e+00> : vector<1x4xf32>
      %15 = tpu.matmul %13, %14, %cst_14 {dimension_numbers = #tpu.dot_dimension_numbers<[1], [0], [0], [1], [0, 0, 1, 1], [], []>} : vector<1x4xf32>, vector<4x4xf32>, vector<1x4xf32> -> vector<1x4xf32>
      %c0_15 = arith.constant 0 : index
      %c0_16 = arith.constant 0 : index
      %16 = vector.load %arg4[%c0_15, %c0_16] : memref<1x4xf32, #tpu.memory_space<vmem>>, vector<1x4xf32>
      %17 = arith.addf %15, %16 : vector<1x4xf32>
      %18 = arith.negf %17 : vector<1x4xf32>
      %19 = math.exp %18 : vector<1x4xf32>
      %cst_17 = arith.constant 1.000000e+00 : f32
      %20 = vector.broadcast %cst_17 : f32 to vector<1x4xf32>
      %21 = arith.addf %20, %19 : vector<1x4xf32>
      %22 = arith.divf %20, %21 : vector<1x4xf32>
      %23 = vector.shape_cast %22 : vector<1x4xf32> to vector<1x1x4xf32>
      %c0_18 = arith.constant 0 : index
      %c0_19 = arith.constant 0 : index
      %c0_20 = arith.constant 0 : index
      %24 = vector.load %arg5[%c0_18, %c0_19, %c0_20] : memref<1x1x4xf32, #tpu.memory_space<vmem>>, vector<1x1x4xf32>
      tpu.vector_store %arg5[%c0_18, %c0_19, %c0_20], %23 {strides = array<i32>} : memref<1x1x4xf32, #tpu.memory_space<vmem>>, vector<1x1x4xf32>,
    } else {
    }
    return
  }
  func.func @transform_0(%arg0: i32, %arg1: i32) -> (i32, i32, i32) {
    %c0_i32 = arith.constant 0 : i32
    %c0_i32_0 = arith.constant 0 : i32
    return %arg0, %c0_i32, %arg1 : i32, i32, i32
  }
  func.func @transform_1(%arg0: i32, %arg1: i32) -> (i32, i32) {
    %c0_i32 = arith.constant 0 : i32
    %c0_i32_0 = arith.constant 0 : i32
    %c0_i32_1 = arith.constant 0 : i32
    return %c0_i32, %c0_i32_0 : i32, i32
  }
  func.func @transform_2(%arg0: i32, %arg1: i32) -> (i32, i32) {
    %c0_i32 = arith.constant 0 : i32
    %c0_i32_0 = arith.constant 0 : i32
    %c0_i32_1 = arith.constant 0 : i32
    return %c0_i32, %c0_i32_0 : i32, i32
  }
  func.func @transform_3(%arg0: i32, %arg1: i32) -> (i32, i32, i32) {
    %c0_i32 = arith.constant 0 : i32
    %c0_i32_0 = arith.constant 0 : i32
    %c0_i32_1 = arith.constant 0 : i32
    return %arg0, %c0_i32, %c0_i32_0 : i32, i32, i32
  }
}

</mosaic_0001>

<llo_original>
// kernel: tpu_custom_call.1
$region0: #{tpu_custom_call.1}
  #allocation0 [shape = 'u32[]', space=smem, size = 0x4, offset = 0x4, fixed_abs, tag = 'smem constant byte address 0x4 - core index']
  #allocation1 [shape = 'u32[72,128]{1,0:T(1,128)}', space=vmem, size = 0x9000, scoped, tag = 'internal scratch']
  #allocation2 [shape = 'f32[1,4]{1,0:T(1,128)}', space=vmem, size = 0x200, scoped, tag = 'scratch operand']
  %s0 = inlined_call_operand.hbm [shape: f32[2,4,256], index: 0, kind: input, shape index: {}]
  %s1 = inlined_call_operand.hbm [shape: f32[4,4], index: 1, kind: input, shape index: {}]
  %s2 = inlined_call_operand.vmem [shape: f32[1,4], index: 2, kind: input, shape index: {}]
  %s3 = inlined_call_operand.hbm [shape: f32[2,1,4], index: 3, kind: output, shape index: {}]
  %s4 = sld [smem:[#allocation0]]
  $region61: #{tpu_custom_call.1} parent=0
    _
  %s6 = ssub.s32 1, %s4
  %s7 = scalar_select 0, %s6, %s4
  $region1: #{tpu_custom_call.1} parent=0
    #allocation3 [shape = 'u8[8192]{0}', space=vmem, size = 0x2000, scoped, tag = 'input window, operand 0']
    #allocation4 [shape = 's32[2]{0}', space=sflag, size = 0x8, scoped, tag = 'scoped memory for tpu_custom_call.1']
    #allocation5 [shape = 's32[2]{0}', space=sflag, size = 0x8, scoped, tag = 'scoped memory for tpu_custom_call.1']
    #allocation6 [shape = 'u8[2048]{0}', space=vmem, size = 0x800, scoped, tag = 'input window, operand 1, single buffered']
    #allocation7 [shape = 's32[1]{0}', space=sflag, size = 0x4, scoped, tag = 'scoped memory for tpu_custom_call.1']
    #allocation8 [shape = 'u8[1024]{0}', space=vmem, size = 0x400, scoped, tag = 'output window, operand 0']
    %8 = vsyncpa [#allocation4], 0
    %s9 = scalar_lea.sflag [#allocation4], 1
    %10 = vsyncpa %s9, 0
    %11 = vsyncpa [#allocation7], 0
    %12 = vsyncpa [#allocation5], 0
    %s13 = scalar_lea.sflag [#allocation5], 1
    %14 = vsyncpa %s13, 0
    loop: start=0, step=1, limit=4
    $region2: #{tpu_custom_call.1} parent=1 // loop_pre_header
      _
    $region3: #{tpu_custom_call.1} parent=1 // loop_header
      %s16 = sphi 0, %s20
      %p17 = scmp.ge.s32.totalorder %s16, 4
      %s23 = sphi 0, %s35
      %s24 = sphi 0, %s31
      %s25 = sphi 0, %s23
      %s26 = sphi 0, %s24
      %s27 = sphi 0, %s25
      %s28 = sphi 0, %s26
      %s40 = sphi 0, %s42
      %s43 = sphi 0, %s40
      %s44 = sphi 0, %s43
      %s60 = sphi 0, %s44
      %s64 = sphi 0, %s64
      %s66 = sphi 0, %s64
      %s67 = sphi 0, %s66
      %s81 = sphi 0, %s67
      %s85 = sphi 0, %s85
      %s87 = sphi 0, %s85
      %s88 = sphi 0, %s87
      %s102 = sphi 0, %s88
      %s108 = sphi 0, %s110
      %s111 = sphi 0, %s108
      %s112 = sphi 0, %s111
      %s128 = sphi 0, %s112
    $region4: #{tpu_custom_call.1} parent=1 // loop_header_branch
      %19 = sbr.rel (%p17) target = $region8
    $region5: #{tpu_custom_call.1} parent=1 // loop_body
      %s21 = ssub.s32 %s16, 1
      %s22 = ssub.s32 %s16, 2
      %s29 = sadd.s32 1, %s24
      %p30 = scmp.ge.s32.totalorder %s29, 1
      %s31 = scalar_select %p30, 0, %s29
      %s32 = sadd.s32 1, %s23
      %s33 = scalar_select %p30, %s32, %s23
      %p34 = scmp.ge.s32.totalorder %s33, 2
      %s35 = scalar_select %p34, 0, %s33
      %s36 = ssub.s32 %s23, %s35
      %s37 = ssub.s32 %s24, %s31
      %s38 = sor.u32 %s36, %s37
      %p39 = scmp.eq.s32.totalorder %s38, 0
      %s41 = sadd.s32 %s40, 1
      %s42 = scalar_select %p39, %s40, %s41
      %p45 = pneg %p39
      %p46 = scmp.eq.s32.totalorder %s16, 1
      %p47 = por %p45, %p46
      %p48 = scmp.ne.s32.totalorder %s40, %s43
      %p49 = scmp.eq.s32.totalorder %s16, 0
      %p50 = por %p48, %p49
      %p51 = scmp.ne.s32.totalorder %s40, %s43
      %p52 = scmp.eq.s32.totalorder %s21, 1
      %p53 = por %p51, %p52
      %p54 = scmp.ne.s32.totalorder %s43, %s44
      %p55 = scmp.eq.s32.totalorder %s21, 0
      %p56 = por %p54, %p55
      %p57 = scmp.ne.s32.totalorder %s43, %s44
      %p58 = scmp.eq.s32.totalorder %s22, 1
      %p59 = por %p57, %p58
      %p61 = scmp.ne.s32.totalorder %s44, %s60
      %p62 = scmp.eq.s32.totalorder %s22, 0
      %p63 = por %p61, %p62
      %s65 = sadd.s32 %s64, 1
      %p68 = scmp.eq.s32.totalorder %s16, 1
      %p69 = scmp.ne.s32.totalorder %s64, %s66
      %p70 = scmp.eq.s32.totalorder %s16, 0
      %p71 = por %p69, %p70
      %p72 = scmp.ne.s32.totalorder %s64, %s66
      %p73 = scmp.eq.s32.totalorder %s21, 1
      %p74 = por %p72, %p73
      %p75 = scmp.ne.s32.totalorder %s66, %s67
      %p76 = scmp.eq.s32.totalorder %s21, 0
      %p77 = por %p75, %p76
      %p78 = scmp.ne.s32.totalorder %s66, %s67
      %p79 = scmp.eq.s32.totalorder %s22, 1
      %p80 = por %p78, %p79
      %p82 = scmp.ne.s32.totalorder %s67, %s81
      %p83 = scmp.eq.s32.totalorder %s22, 0
      %p84 = por %p82, %p83
      %s86 = sadd.s32 %s85, 1
      %p89 = scmp.eq.s32.totalorder %s16, 1
      %p90 = scmp.ne.s32.totalorder %s85, %s87
      %p91 = scmp.eq.s32.totalorder %s16, 0
      %p92 = por %p90, %p91
      %p93 = scmp.ne.s32.totalorder %s85, %s87
      %p94 = scmp.eq.s32.totalorder %s21, 1
      %p95 = por %p93, %p94
      %p96 = scmp.ne.s32.totalorder %s87, %s88
      %p97 = scmp.eq.s32.totalorder %s21, 0
      %p98 = por %p96, %p97
      %p99 = scmp.ne.s32.totalorder %s87, %s88
      %p100 = scmp.eq.s32.totalorder %s22, 1
      %p101 = por %p99, %p100
      %p103 = scmp.ne.s32.totalorder %s88, %s102
      %p104 = scmp.eq.s32.totalorder %s22, 0
      %p105 = por %p103, %p104
      %s106 = ssub.s32 %s23, %s35
      %p107 = scmp.eq.s32.totalorder %s106, 0
      %s109 = sadd.s32 %s108, 1
      %s110 = scalar_select %p107, %s108, %s109
      %p113 = pneg %p107
      %p114 = scmp.eq.s32.totalorder %s16, 1
      %p115 = por %p113, %p114
      %p116 = scmp.ne.s32.totalorder %s108, %s111
      %p117 = scmp.eq.s32.totalorder %s16, 0
      %p118 = por %p116, %p117
      %p119 = scmp.ne.s32.totalorder %s108, %s111
      %p120 = scmp.eq.s32.totalorder %s21, 1
      %p121 = por %p119, %p120
      %p122 = scmp.ne.s32.totalorder %s111, %s112
      %p123 = scmp.eq.s32.totalorder %s21, 0
      %p124 = por %p122, %p123
      %p125 = scmp.ne.s32.totalorder %s111, %s112
      %p126 = scmp.eq.s32.totalorder %s22, 1
      %p127 = por %p125, %p126
      %p129 = scmp.ne.s32.totalorder %s112, %s128
      %p130 = scmp.eq.s32.totalorder %s22, 0
      %p131 = por %p129, %p130
      %p132 = scmp.le.s32.totalorder 1, %s16
      %p133 = scmp.lt.s32.totalorder %s16, 3
      %p134 = pnand %p132, %p133
      %p135 = pneg %p134
      // Predicated region
      $region9: #{tpu_custom_call.1} parent=5 // pred_check
        _
      $region10: #{tpu_custom_call.1} parent=5 // pred_check_branch
        %137 = sbr.rel (%p134) target = $region12
      $region11: #{tpu_custom_call.1} parent=5 // pred_region
        %s138 = ssub.s32 %s16, 1
        // Predicated region
        $region13: #{tpu_custom_call.1} parent=11 // pred_check
          %p139 = pneg %p77
        $region14: #{tpu_custom_call.1} parent=11 // pred_check_branch
          %141 = sbr.rel (%p139) target = $region16
        $region15: #{tpu_custom_call.1} parent=11 // pred_region
          %143 = vsyncadd [#allocation7], 0
          %s145 = sshll.u32 %s1, 4
          %s146 = int_to_ptr.hbm [resolvable:$true] %s145
          %s147 = sshll.u32 [#allocation6], 4
          %s148 = int_to_ptr.vmem [resolvable:$true] %s147
          %150 = dma.hbm_to_vmem [thread:$0]  %s146, 64, %s148, [#allocation7]
        $region16: #{tpu_custom_call.1} parent=11 // pred_fallthru
          _
        // Predicated region
        $region17: #{tpu_custom_call.1} parent=11 // pred_check
          %p151 = pneg %p98
        $region18: #{tpu_custom_call.1} parent=11 // pred_check_branch
          %153 = sbr.rel (%p151) target = $region20
        $region19: #{tpu_custom_call.1} parent=11 // pred_region
          _
        $region20: #{tpu_custom_call.1} parent=11 // pred_fallthru
          _
      $region12: #{tpu_custom_call.1} parent=5 // pred_fallthru
        _
      %p154 = scmp.lt.s32.totalorder %s16, 2
      // Predicated region
      $region21: #{tpu_custom_call.1} parent=5 // pred_check
        %p155 = pneg %p154
      $region22: #{tpu_custom_call.1} parent=5 // pred_check_branch
        %157 = sbr.rel (%p155) target = $region24
      $region23: #{tpu_custom_call.1} parent=5 // pred_region
        // Predicated region
        $region25: #{tpu_custom_call.1} parent=23 // pred_check
          %p158 = pneg %p50
        $region26: #{tpu_custom_call.1} parent=23 // pred_check_branch
          %160 = sbr.rel (%p158) target = $region28
        $region27: #{tpu_custom_call.1} parent=23 // pred_region
          %s161 = sand.u32 %s40, 1
          %s162 = scalar_lea.sflag [#allocation4], %s161
          %s163 = sand.u32 %s40, 1
          %s164 = smul.addr %s163, 8
          %s165 = scalar_lea.vmem [#allocation3], %s164
          %s166 = smul.u32 2, %s24
          %168 = vsyncadd %s162, 0
          %s169 = smul.addr %s23, 2
          %s170 = sadd.s32 %s166, %s169
          %s171 = smul.addr %s170, 4
          %s172 = scalar_lea.hbm %s0, %s171
          %s174 = sshll.u32 %s172, 4
          %s175 = int_to_ptr.hbm [resolvable:$true] %s174
          %s176 = sshll.u32 %s165, 4
          %s177 = int_to_ptr.vmem [resolvable:$true] %s176
          %179 = dma.hbm_to_vmem [thread:$0]  %s175, 128, %s177, %s162
        $region28: #{tpu_custom_call.1} parent=23 // pred_fallthru
          _
      $region24: #{tpu_custom_call.1} parent=5 // pred_fallthru
        _
      %p180 = scmp.le.s32.totalorder 1, %s16
      %p181 = scmp.lt.s32.totalorder %s16, 3
      %p182 = pnand %p180, %p181
      %p183 = pneg %p182
      // Predicated region
      $region29: #{tpu_custom_call.1} parent=5 // pred_check
        _
      $region30: #{tpu_custom_call.1} parent=5 // pred_check_branch
        %185 = sbr.rel (%p182) target = $region32
      $region31: #{tpu_custom_call.1} parent=5 // pred_region
        %s186 = ssub.s32 %s16, 1
        %s187 = sand.u32 %s43, 1
        %s188 = scalar_lea.sflag [#allocation4], %s187
        %s189 = sand.u32 %s43, 1
        %s190 = smul.addr %s189, 8
        %s191 = scalar_lea.vmem [#allocation3], %s190
        // Predicated region
        $region33: #{tpu_custom_call.1} parent=31 // pred_check
          %p192 = pneg %p56
        $region34: #{tpu_custom_call.1} parent=31 // pred_check_branch
          %194 = sbr.rel (%p192) target = $region36
        $region35: #{tpu_custom_call.1} parent=31 // pred_region
          %196 = dma.done %s188, 128
        $region36: #{tpu_custom_call.1} parent=31 // pred_fallthru
          _
        // Predicated region
        $region37: #{tpu_custom_call.1} parent=31 // pred_check
          %p197 = pneg %p77
        $region38: #{tpu_custom_call.1} parent=31 // pred_check_branch
          %199 = sbr.rel (%p197) target = $region40
        $region39: #{tpu_custom_call.1} parent=31 // pred_region
          %201 = dma.done [#allocation7], 64
        $region40: #{tpu_custom_call.1} parent=31 // pred_fallthru
          _
        %s202 = sand.u32 %s43, 1
        %s203 = scalar_lea.sflag [#allocation4], %s202
        %s204 = sand.u32 %s43, 1
        %s205 = smul.addr %s204, 8
        %s206 = scalar_lea.vmem [#allocation3], %s205
        %p207 = pneg %p56
        %p208 = pneg %p53
        %p209 = pneg %p77
        %p210 = pneg %p74
        %p211 = pneg %p98
        %p212 = pneg %p95
        %p213 = pneg %p124
        %p214 = pneg %p121
        %s215 = sand.u32 %s111, 1
        %s216 = scalar_lea.sflag [#allocation5], %s215
        %s217 = sand.u32 %s111, 1
        %s218 = scalar_lea.vmem [#allocation8], %s217
        %s219 = smul.u32 2, %s26
        %p220 = scmp.eq.s32.totalorder %s26, 0
        // Predicated region
        $region41: #{tpu_custom_call.1} parent=31 // pred_check
          %p221 = pneg %p220
        $region42: #{tpu_custom_call.1} parent=31 // pred_check_branch
          %223 = sbr.rel (%p221) target = $region44
        $region43: #{tpu_custom_call.1} parent=31 // pred_region
          %vm224 = vcmask 24576
          %225 = vst.msk [vmem:[#allocation2] sm:$0x1] %vm224, 0.0
        $region44: #{tpu_custom_call.1} parent=31 // pred_fallthru
          _
        %v226 = vld [vmem:[%s191] sm:$0xff]
        %v227 = vld [vmem:[#allocation2] sm:$0x1]
        %229 = vst [vmem:[#allocation1] ss:$2 sm:$0xff] %v226
        %v230 = vld.sshfl [vmem:[#allocation1] sm:$0xff pattern:$0x75316420]
        %v231 = vld.sshfl [vmem:[#allocation1 + $0x8] sm:$0xff pattern:$0x75316420]
        %vm234 = vcmask 1043456
        %v235 = vsel %vm234, %v230, 0.0
        %v236 = vsel %vm234, %v231, 0.0
        %v237 = vadd.f32 %v235, %v236
        %238 = vadd.xlane.f32.xlu0 %v237
        %v239 = vpop.xlane.xlu0 %238
        %v241 = vperm.slane %v239, 0
        %v242 = vperm.slane %v239, 1
        %v243 = vperm.slane %v239, 2
        %v244 = vperm.slane %v239, 3
        %245 = vst [vmem:[#allocation1] ss:$9 sm:$0xff] %v241
        %s246 = scalar_lea.vmem [#allocation1], 1
        %247 = vst [vmem:[%s246] ss:$9 sm:$0xff] %v242
        %s248 = scalar_lea.vmem [#allocation1], 2
        %249 = vst [vmem:[%s248] ss:$9 sm:$0xff] %v243
        %s250 = scalar_lea.vmem [#allocation1], 3
        %251 = vst [vmem:[%s250] ss:$9 sm:$0xff] %v244
        %v252 = vld [vmem:[#allocation1] sm:$0xff]
        %253 = vset.pattern.permute.xlu0 0
        %254 = vperm.xlu0 %253, %v252
        %v255 = vpop.permute.xlu0 %254
        %v256 = vlaneseq
        %v257 = vand.u32 %v256, 127
        %v258 = vperm.slane %v255, %v257
        %v260 = vadd.f32 %v227, %v258
        %vm261 = vcmask 24576
        %262 = vst.msk [vmem:[#allocation2] sm:$0x1] %vm261, %v260
        // Predicated region
        $region45: #{tpu_custom_call.1} parent=31 // pred_check
          %p263 = pneg %p220
        $region46: #{tpu_custom_call.1} parent=31 // pred_check_branch
          %265 = sbr.rel (%p263) target = $region48
        $region47: #{tpu_custom_call.1} parent=31 // pred_region
          %v266 = vld [vmem:[#allocation2] sm:$0x1]
          %v267 = vmul.f32 %v266, 0.00390625
          %v268 = vld [vmem:[#allocation6] sm:$0xf]
          %v269 = vld [vmem:[%s2] sm:$0x1]
          %vm270 = vcmask 31744
          %v272 = vsel %vm270, %v267, 0
          %v275 = vsel %vm234, %v268, 0
          %277 = vmatpush.msra.mxu0 0.0
          %278 = vmatpush.msra.mxu0 0.0
          %279 = vmatpush.msra.mxu0 0.0
          %280 = vmatpush.msra.mxu0 0.0
          %281 = vmatpush.msra.mxu0 0.0
          %282 = vmatpush.msra.mxu0 0.0
          %283 = vmatpush.msra.mxu0 0.0
          %284 = vmatpush.msra.mxu0 0.0
          %285 = vmatpush.msra.mxu0 0.0
          %286 = vmatpush.msra.mxu0 0.0
          %287 = vmatpush.msra.mxu0 0.0
          %288 = vmatpush.msra.mxu0 0.0
          %289 = vmatpush.msra.mxu0 0.0
          %290 = vmatpush.msra.mxu0 0.0
          %291 = vmatpush.msra.mxu0 0.0
          %292 = vmatpush.msra.mxu0 %v275
          %293 = vmatmul.f32.gmra.mxu0 %v272
          %v294 = vpop.f32.mrf.mxu0
          %v295 = vadd.f32 %v269, %v294
          %296 = vdwg.mxu0
          %v297 = vxor.u32 %v295, 2147483648
          %v298 = vmul.f32 %v297, 1.442695
          %v299 = vpow.pop %v298
          %v300 = vadd.f32 %v299, 1.0
          %v301 = vrcp.pop %v300
          %v302 = vmul.f32 %v300, %v301
          %v303 = vsub.f32 1.0, %v302
          %v304 = vmul.f32 %v301, %v303
          %v305 = vadd.f32 %v301, %v304
          %vm306 = vweird.f32 %v300
          %vm307 = vweird.f32 %v301
          %vm308 = vmor %vm306, %vm307
          %v309 = vsel %vm308, %v301, %v305
          %v310 = vand.u32 2147483647, %v300
          %vm311 = vcmp.eq.f32.partialorder %v310, 8.507059e+37
          %v312 = vand.u32 %v300, 2147483648
          %v313 = vor.u32 1.1754944e-38, %v312
          %v314 = vsel %vm311, %v313, %v309
          %v315 = vmul.f32 1.0, %v314
          %316 = vst.msk [vmem:[%s218] sm:$0x1] %vm261, %v315
        $region48: #{tpu_custom_call.1} parent=31 // pred_fallthru
          _
        %s317 = sand.u32 %s111, 1
        %s318 = scalar_lea.sflag [#allocation5], %s317
        %s319 = sand.u32 %s111, 1
        %s320 = scalar_lea.vmem [#allocation8], %s319
        // Predicated region
        $region49: #{tpu_custom_call.1} parent=31 // pred_check
          %p321 = pneg %p121
        $region50: #{tpu_custom_call.1} parent=31 // pred_check_branch
          %323 = sbr.rel (%p321) target = $region52
        $region51: #{tpu_custom_call.1} parent=31 // pred_region
          %325 = vsyncadd %s318, 0
          %s326 = scalar_lea.hbm %s3, %s25
          %s328 = sshll.u32 %s320, 4
          %s329 = int_to_ptr.vmem [resolvable:$true] %s328
          %s330 = sshll.u32 %s326, 4
          %s331 = int_to_ptr.hbm [resolvable:$true] %s330
          %333 = dma.vmem_to_hbm [thread:$0]  %s329, 16, %s331, %s318
        $region52: #{tpu_custom_call.1} parent=31 // pred_fallthru
          _
      $region32: #{tpu_custom_call.1} parent=5 // pred_fallthru
        _
      %p334 = scmp.le.s32.totalorder 2, %s16
      // Predicated region
      $region53: #{tpu_custom_call.1} parent=5 // pred_check
        %p335 = pneg %p334
      $region54: #{tpu_custom_call.1} parent=5 // pred_check_branch
        %337 = sbr.rel (%p335) target = $region56
      $region55: #{tpu_custom_call.1} parent=5 // pred_region
        %s338 = ssub.s32 %s16, 2
        // Predicated region
        $region57: #{tpu_custom_call.1} parent=55 // pred_check
          %p339 = pneg %p127
        $region58: #{tpu_custom_call.1} parent=55 // pred_check_branch
          %341 = sbr.rel (%p339) target = $region60
        $region59: #{tpu_custom_call.1} parent=55 // pred_region
          %s342 = sand.u32 %s112, 1
          %s343 = scalar_lea.sflag [#allocation5], %s342
          %s344 = sand.u32 %s112, 1
          %s345 = scalar_lea.vmem [#allocation8], %s344
          %347 = dma.done %s343, 16
        $region60: #{tpu_custom_call.1} parent=55 // pred_fallthru
          _
      $region56: #{tpu_custom_call.1} parent=5 // pred_fallthru
        _
    $region6: #{tpu_custom_call.1} parent=1 // loop_footer
      %s20 = sadd.s32 1, %s16
    $region7: #{tpu_custom_call.1} parent=1 // loop_footer_branch
      %15 = sbr.rel target = $region3
    $region8: #{tpu_custom_call.1} parent=1 // loop_exit
      _
    %348 = vsyncpa [#allocation4], 1
    %s349 = scalar_lea.sflag [#allocation4], 1
    %350 = vsyncpa %s349, 1
    %351 = vsyncpa [#allocation7], 1
    %352 = vsyncpa [#allocation5], 1
    %s353 = scalar_lea.sflag [#allocation5], 1
    %354 = vsyncpa %s353, 1

</llo_original>
